<compile_context>
chip_gen: v7x
topology: tpu7x:2x2x1
jax: 0.10.0
libtpu: 0.0.40
codegen_flags: <defaults>
</compile_context>

<pallas_src>
import functools

import jax
import jax.numpy as jnp
from jax.experimental import pallas as pl
from jax.experimental.pallas import tpu as pltpu


def _hbm_copy_kernel(num_chunks, src_hbm, dst_hbm, sems):
    """Copy src -> dst entirely with HBM->HBM DMAs (no VMEM staging)."""
    copies = [
        pltpu.make_async_copy(src_hbm.at[c], dst_hbm.at[c], sems.at[c])
        for c in range(num_chunks)
    ]
    for cp in copies:   # issue every DMA first ...
        cp.start()
    for cp in copies:   # ... then wait; the copies run concurrently.
        cp.wait()


def _pick_num_chunks(total, itemsize, min_chunk_bytes=1 << 20):
    """A handful of chunks for large tensors; 1 chunk for small ones."""
    for k in (8, 4, 2):
        if total % k == 0 and (total // k) * itemsize >= min_chunk_bytes:
            return k
    return 1


@jax.jit
def _materialized_forward(weight):
    total = weight.size
    itemsize = jnp.dtype(weight.dtype).itemsize
    num_chunks = _pick_num_chunks(total, itemsize)
    # Contiguous reshape is a free bitcast under jit; no padding, no slicing.
    x2d = weight.reshape(num_chunks, total // num_chunks)
    out2d = pl.pallas_call(
        functools.partial(_hbm_copy_kernel, num_chunks),
        out_shape=jax.ShapeDtypeStruct(x2d.shape, x2d.dtype),
        in_specs=[pl.BlockSpec(memory_space=pl.ANY)],
        out_specs=pl.BlockSpec(memory_space=pl.ANY),
        scratch_shapes=[pltpu.SemaphoreType.DMA((num_chunks,))],
        cost_estimate=pl.CostEstimate(
            flops=0,
            transcendentals=0,
            bytes_accessed=2 * total * itemsize,
        ),
    )(x2d)
    return out2d.reshape(weight.shape)


def synthesized_image_forward(weight, *, materialize=False):
    """Pallas implementation of SynthesizedImage.forward().

    forward() is a pure identity on the parameter, so the optimal path is to
    return `weight` directly (0 bytes of HBM traffic).  Pass materialize=True
    to get a fresh, physically copied buffer produced by the Pallas kernel.
    """
    if not materialize:
        return weight
    return _materialized_forward(weight)


class SynthesizedImageJAX:
    """Mirror of the PyTorch module: a parameter + identity forward."""

    def __init__(self, img_shape, key):
        # torch.rand(*img_shape) -> uniform [0, 1)
        self.weight = jax.random.uniform(key, img_shape, dtype=jnp.float32)

    def __call__(self, materialize=False):
        return synthesized_image_forward(self.weight, materialize=materialize)


if __name__ == "__main__":
    # Small NCHW synthetic image (single-DMA path).
    img_shape = (2, 4, 16, 16)
    model = SynthesizedImageJAX(img_shape, jax.random.PRNGKey(0))

    # Default forward: short-circuit identity (no kernel launch).
    out_fast = jax.block_until_ready(model())
    assert out_fast.shape == img_shape
    assert out_fast.dtype == jnp.float32
    assert jnp.array_equal(out_fast, model.weight), "forward() must return the weight"

    # Materialized forward: Pallas HBM->HBM DMA copy.
    out_copy = jax.block_until_ready(model(materialize=True))
    assert out_copy.shape == img_shape
    assert out_copy.dtype == jnp.float32
    assert jnp.array_equal(out_copy, model.weight), "copy must equal the weight"

    # Larger image exercising the multi-chunk DMA path (num_chunks > 1).
    img_shape2 = (1, 3, 512, 512)
    model2 = SynthesizedImageJAX(img_shape2, jax.random.PRNGKey(1))
    out2 = jax.block_until_ready(model2(materialize=True))
    assert out2.shape == img_shape2
    assert jnp.array_equal(out2, model2.weight), "copy must equal the weight"

    print("KERNEL_OK")
</pallas_src>

<mosaic_0001>
module attributes {stable_mosaic.version = 11 : i64} {
  func.func @_hbm_copy_kernel(%arg0: memref<1x2048xf32, #tpu.memory_space<any>>, %arg1: memref<1x2048xf32, #tpu.memory_space<any>>, %arg2: memref<1x!tpu.dma_semaphore, #tpu.memory_space<semaphore_mem>>) attributes {dimension_semantics = [], scalar_prefetch = 0 : i64, scratch_operands = 1 : i64, tpu.core_type = #tpu.core_type<tc>} {
    %c0_i32 = arith.constant 0 : i32
    %c0_i32_0 = arith.constant 0 : i32
    %c0_i32_1 = arith.constant 0 : i32
    %c0_i32_2 = arith.constant 0 : i32
    %0 = tpu.memref_slice %arg0[%c0_i32, %c0_i32_2] : memref<1x2048xf32, #tpu.memory_space<any>> -> memref<1x2048xf32, #tpu.memory_space<any>>
    %1 = tpu.memref_squeeze %0 : memref<1x2048xf32, #tpu.memory_space<any>> -> memref<2048xf32, #tpu.memory_space<any>>
    %c0_i32_3 = arith.constant 0 : i32
    %2 = tpu.memref_slice %arg1[%c0_i32_0, %c0_i32_3] : memref<1x2048xf32, #tpu.memory_space<any>> -> memref<1x2048xf32, #tpu.memory_space<any>>
    %3 = tpu.memref_squeeze %2 : memref<1x2048xf32, #tpu.memory_space<any>> -> memref<2048xf32, #tpu.memory_space<any>>
    %4 = tpu.memref_slice %arg2[%c0_i32_1] : memref<1x!tpu.dma_semaphore, #tpu.memory_space<semaphore_mem>> -> memref<1x!tpu.dma_semaphore, #tpu.memory_space<semaphore_mem>>
    %5 = tpu.memref_squeeze %4 : memref<1x!tpu.dma_semaphore, #tpu.memory_space<semaphore_mem>> -> memref<!tpu.dma_semaphore, #tpu.memory_space<semaphore_mem>>
    tpu.enqueue_dma source(%1 : memref<2048xf32, #tpu.memory_space<any>>) target(%3 : memref<2048xf32, #tpu.memory_space<any>>) target_semaphore(%5 : memref<!tpu.dma_semaphore, #tpu.memory_space<semaphore_mem>>)
    %c0_i32_4 = arith.constant 0 : i32
    %c0_i32_5 = arith.constant 0 : i32
    %c0_i32_6 = arith.constant 0 : i32
    %c0_i32_7 = arith.constant 0 : i32
    %6 = tpu.memref_slice %arg0[%c0_i32_4, %c0_i32_7] : memref<1x2048xf32, #tpu.memory_space<any>> -> memref<1x2048xf32, #tpu.memory_space<any>>
    %7 = tpu.memref_squeeze %6 : memref<1x2048xf32, #tpu.memory_space<any>> -> memref<2048xf32, #tpu.memory_space<any>>
    %c0_i32_8 = arith.constant 0 : i32
    %8 = tpu.memref_slice %arg1[%c0_i32_5, %c0_i32_8] : memref<1x2048xf32, #tpu.memory_space<any>> -> memref<1x2048xf32, #tpu.memory_space<any>>
    %9 = tpu.memref_squeeze %8 : memref<1x2048xf32, #tpu.memory_space<any>> -> memref<2048xf32, #tpu.memory_space<any>>
    %10 = tpu.memref_slice %arg2[%c0_i32_6] : memref<1x!tpu.dma_semaphore, #tpu.memory_space<semaphore_mem>> -> memref<1x!tpu.dma_semaphore, #tpu.memory_space<semaphore_mem>>
    %11 = tpu.memref_squeeze %10 : memref<1x!tpu.dma_semaphore, #tpu.memory_space<semaphore_mem>> -> memref<!tpu.dma_semaphore, #tpu.memory_space<semaphore_mem>>
    tpu.wait_dma2 semaphore(%11 : memref<!tpu.dma_semaphore, #tpu.memory_space<semaphore_mem>>) src(%7 : memref<2048xf32, #tpu.memory_space<any>>) dst(%9 : memref<2048xf32, #tpu.memory_space<any>>)
    return
  }
}

</mosaic_0001>

<llo_original>
// kernel: _materialized_forward.1
$region0: #{_materialized_forward.1}
  #allocation0 [shape = 'u32[]', space=smem, size = 0x4, offset = 0x4, fixed_abs, tag = 'smem constant byte address 0x4 - core index']
  #allocation1 [shape = 'u32[144,128]{1,0:T(1,128)}', space=vmem, size = 0x12000, scoped, tag = 'internal scratch']
  #allocation2 [shape = 's32[1]{0}', space=sflag, size = 0x4, scoped, tag = 'scratch operand']
  #allocation3 [shape = 's32[]', space=sflag, size = 0x4, offset = 0, fixed_abs, tag = 'sflag constant byte address 0x0 - dummy sync flag']
  %s0 = inlined_call_operand.vmem [shape: f32[1,2048], index: 0, kind: input, shape index: {}]
  %s1 = inlined_call_operand.vmem [shape: f32[1,2048], index: 1, kind: output, shape index: {}]
  %s2 = sld [smem:[#allocation0]]
  $region36: #{_materialized_forward.1} parent=0
    _
  %s4 = ssub.s32 1, %s2
  %s5 = scalar_select 0, %s4, %s2
  %p7 = scmp.lt.u32.totalorder 16, 8
  %p8 = pneg %p7
  // Predicated region
  $region2: #{_materialized_forward.1} parent=0 // pred_check
    _
  $region3: #{_materialized_forward.1} parent=0 // pred_check_branch
    %10 = sbr.rel (%p7) target = $region5
  $region4: #{_materialized_forward.1} parent=0 // pred_region
    %s25 = sand.u32 16, 7
    %p26 = scmp.eq.s32.totalorder %s25, 0
    // Predicated region
    $region17: #{_materialized_forward.1} parent=4 // pred_check
      %p27 = pneg %p26
    $region18: #{_materialized_forward.1} parent=4 // pred_check_branch
      %29 = sbr.rel (%p27) target = $region20
    $region19: #{_materialized_forward.1} parent=4 // pred_region
      loop: start=0, step=1, limit=1
      $region21: #{_materialized_forward.1} parent=19 // loop_pre_header
        _
      $region22: #{_materialized_forward.1} parent=19 // loop_header
        %s31 = sphi 0, %s35
        %p32 = scmp.ge.s32.totalorder %s31, 1
        %s36 = sphi %s0, %s0
        %s37 = sphi %s1, %s1
      $region23: #{_materialized_forward.1} parent=19 // loop_header_branch
        %34 = sbr.rel (%p32) target = $region27
      $region24: #{_materialized_forward.1} parent=19 // loop_body
        %v38 = vld [vmem:[%s36] sm:$0xff]
        %39 = vst [vmem:[%s37] sm:$0xff] %v38
        %v40 = vld [vmem:[%s36 + $0x8] sm:$0xff]
        %41 = vst [vmem:[%s37 + $0x8] sm:$0xff] %v40
      $region25: #{_materialized_forward.1} parent=19 // loop_footer
        %s35 = sadd.s32 1, %s31
      $region26: #{_materialized_forward.1} parent=19 // loop_footer_branch
        %30 = sbr.rel target = $region22
      $region27: #{_materialized_forward.1} parent=19 // loop_exit
        _
    $region20: #{_materialized_forward.1} parent=4 // pred_fallthru
      _
    %p42 = pneg %p26
    // Predicated region
    $region28: #{_materialized_forward.1} parent=4 // pred_check
      _
    $region29: #{_materialized_forward.1} parent=4 // pred_check_branch
      %44 = sbr.rel (%p26) target = $region31
    $region30: #{_materialized_forward.1} parent=4 // pred_region
      %s45 = sand.u32 16, 7
    $region31: #{_materialized_forward.1} parent=4 // pred_fallthru
      _
  $region5: #{_materialized_forward.1} parent=0 // pred_fallthru
    _
  // Predicated region
  $region6: #{_materialized_forward.1} parent=0 // pred_check
    %p11 = pneg %p7
  $region7: #{_materialized_forward.1} parent=0 // pred_check_branch
    %13 = sbr.rel (%p11) target = $region9
  $region8: #{_materialized_forward.1} parent=0 // pred_region
    %s14 = sshllo.u32 0, 16
    loop: start=0, step=1, limit=1
    $region10: #{_materialized_forward.1} parent=8 // loop_pre_header
      _
    $region11: #{_materialized_forward.1} parent=8 // loop_header
      %s16 = sphi 0, %s20
      %p17 = scmp.ge.s32.totalorder %s16, 1
      %s21 = sphi %s0, %s0
      %s22 = sphi %s1, %s1
    $region12: #{_materialized_forward.1} parent=8 // loop_header_branch
      %19 = sbr.rel (%p17) target = $region16
    $region13: #{_materialized_forward.1} parent=8 // loop_body
      %v23 = vld [vmem:[%s21] sm:%s14]
      %24 = vst [vmem:[%s22] sm:%s14] %v23
    $region14: #{_materialized_forward.1} parent=8 // loop_footer
      %s20 = sadd.s32 1, %s16
    $region15: #{_materialized_forward.1} parent=8 // loop_footer_branch
      %15 = sbr.rel target = $region11
    $region16: #{_materialized_forward.1} parent=8 // loop_exit
      _
  $region9: #{_materialized_forward.1} parent=0 // pred_fallthru
    _
  // Predicated region
  $region32: #{_materialized_forward.1} parent=0 // pred_check
    _
  $region33: #{_materialized_forward.1} parent=0 // pred_check_branch
    %48 = sbr.rel (0) target = $region35
  $region34: #{_materialized_forward.1} parent=0 // pred_region
    %49 = vsyncadd [#allocation2], 256
  $region35: #{_materialized_forward.1} parent=0 // pred_fallthru
    _
  %51 = dma.done [#allocation2], 256
  %52 = vsyncmov [#allocation2]
  %s53 = vpop.sfrf %52
  %p54 = scmp.eq.s32.totalorder %s53, 0
  %p55 = pneg %p54
  %57 = shalt.err (%p55)

</llo_original>
